<compile_context>
chip_gen: v6e
topology: v6e:2x2x1
jax: 0.10.0
libtpu: 0.0.40
codegen_flags: <defaults>
</compile_context>

<pallas_src>
import functools

import jax
import jax.numpy as jnp
from jax import lax
from jax.experimental import pallas as pl
from jax.experimental.pallas import tpu as pltpu

LANE = 128


def _round_up(x, m):
    return (x + m - 1) // m * m


def gcn_edge_kernel(feats_ref, adj_ref, s_aug_ref, w_fused_ref, b_fused_ref,
                    w_edge_aug_ref, gamma_ref, beta_ref, out_ref, *, n_real):
    """Single-invocation kernel: the whole (padded) problem is resident in VMEM."""
    n_pad, f_pad = out_ref.shape
    edge_aug = s_aug_ref.shape[1]          # edge_dim + 1 (last column = in-degree)

    # Fused (lin_rel | res_connection):  [Np, Fin] @ [Fin, 2*Fp]  -- one MXU matmul.
    xr = jnp.dot(feats_ref[...], w_fused_ref[...],
                 preferred_element_type=jnp.float32) + b_fused_ref[...]
    x_rel = xr[:, :f_pad]                              # lin_rel output (128-aligned slice)
    res = jnp.maximum(xr[:, f_pad:], 0.0)              # relu(res_connection)

    # Neighbour aggregation with the gather/scatter pair hoisted to a counts matrix:
    #   agg = A @ x_rel,  A[n, m] = #edges m -> n.  bf16 counts are exact; widen to f32.
    adj = adj_ref[...].astype(jnp.float32)
    agg = jnp.dot(adj, x_rel, preferred_element_type=jnp.float32)

    # Hoisted edge_lin term:  [s | deg] @ [W_edge ; b_edge].
    # K = edge_dim + 1 (tiny) -> unrolled VPU broadcast FMAs instead of a tiny-K MXU pass.
    s_aug = s_aug_ref[...]
    for d in range(edge_aug):
        agg = agg + s_aug[:, d:d + 1] * w_edge_aug_ref[d:d + 1, :]

    new = jnp.maximum(agg, 0.0)                        # relu(graph_conv); dropout(0) = id
    h = new + res

    # BatchNorm1d, training-mode batch statistics (biased variance); padded rows masked out.
    row_ids = lax.broadcasted_iota(jnp.int32, (n_pad, 1), 0)
    mask = (row_ids < n_real).astype(jnp.float32)
    h = h * mask
    inv_n = 1.0 / float(n_real)
    mean = jnp.sum(h, axis=0, keepdims=True) * inv_n
    cent = (h - mean) * mask
    var = jnp.sum(cent * cent, axis=0, keepdims=True) * inv_n
    inv = lax.rsqrt(var + 1e-5)
    out_ref[...] = (h - mean) * inv * gamma_ref[...] + beta_ref[...]


def gcn_layer_edge(feats, src, dst, edge_attr, params):
    """feats: [N, F_in] f32; src/dst: [E] int32; edge_attr: [E, edge_dim] f32."""
    n, f_in = feats.shape
    e, edge_dim = edge_attr.shape
    f_out = params["w_rel"].shape[1]

    # Node dim padded to 128 so adj columns / all matmul contraction dims are lane-dense.
    n_pad = _round_up(n, LANE)
    fin_pad = _round_up(f_in, LANE)
    f_pad = _round_up(f_out, LANE)

    f32 = jnp.float32
    feats_p = jnp.zeros((n_pad, fin_pad), f32).at[:n, :f_in].set(feats)

    # Hoisted gather/scatter of the x[src] term: A[n, m] = #edges m -> n.
    # Integer counts <= 256 are exact in bf16 -> half HBM/VMEM for the O(N^2) operand.
    adj = jnp.zeros((n_pad, n_pad), f32).at[dst, src].add(1.0).astype(jnp.bfloat16)

    # Hoisted edge_lin term: pre-aggregate edge_attr (and the per-edge bias via the
    # in-degree) by destination node — O(E*edge_dim) scatter-add in the wrapper.
    s = jnp.zeros((n_pad, edge_dim), f32).at[dst].add(edge_attr)
    deg = jnp.zeros((n_pad, 1), f32).at[dst].add(1.0)
    s_aug = jnp.concatenate([s, deg], axis=1)                     # [Np, edge_dim+1]

    # Fused (lin_rel | res_connection) weights / biases; zero padding is exact.
    w_fused = jnp.zeros((fin_pad, 2 * f_pad), f32)
    w_fused = w_fused.at[:f_in, :f_out].set(params["w_rel"])
    w_fused = w_fused.at[:f_in, f_pad:f_pad + f_out].set(params["w_res"])
    b_fused = jnp.zeros((1, 2 * f_pad), f32)
    b_fused = b_fused.at[:, :f_out].set(params["b_rel"])
    b_fused = b_fused.at[:, f_pad:f_pad + f_out].set(params["b_res"])

    # [W_edge ; b_edge] stacked so the kernel's edge term is one small contraction.
    w_edge_aug = jnp.zeros((edge_dim + 1, f_pad), f32)
    w_edge_aug = w_edge_aug.at[:edge_dim, :f_out].set(params["w_edge"])
    w_edge_aug = w_edge_aug.at[edge_dim, :f_out].set(params["b_edge"][0])

    gamma = jnp.ones((1, f_pad), f32).at[:, :f_out].set(params["gamma"])
    beta = jnp.zeros((1, f_pad), f32).at[:, :f_out].set(params["beta"])

    # VMEM budget: actual padded footprint (inputs + output + xr/agg/h intermediates)
    # with 2x headroom, capped at the v7x-safe scoped budget.
    footprint = (feats_p.size + s_aug.size + w_fused.size + b_fused.size +
                 w_edge_aug.size + gamma.size + beta.size + n_pad * f_pad) * 4
    footprint += adj.size * 2                                     # bf16 adjacency
    footprint += (n_pad * 2 * f_pad + 2 * n_pad * f_pad) * 4      # xr + agg/h temporaries
    vmem_limit = int(min(max(2 * footprint, 4 * 1024 * 1024), 32 * 1024 * 1024))

    out_padded = pl.pallas_call(
        functools.partial(gcn_edge_kernel, n_real=n),
        out_shape=jax.ShapeDtypeStruct((n_pad, f_pad), f32),
        compiler_params=pltpu.CompilerParams(vmem_limit_bytes=vmem_limit),
    )(feats_p, adj, s_aug, w_fused, b_fused, w_edge_aug, gamma, beta)
    return out_padded[:n, :f_out]


def reference_forward(feats, src, dst, edge_attr, params):
    """Pure-JAX reference (mirrors the PyTorch forward)."""
    x = feats @ params["w_rel"] + params["b_rel"]
    e = edge_attr @ params["w_edge"] + params["b_edge"]
    msg = x[src] + e
    agg = jnp.zeros_like(x).at[dst].add(msg)
    new = jax.nn.relu(agg)
    res = jax.nn.relu(feats @ params["w_res"] + params["b_res"])
    h = new + res
    mean = h.mean(0, keepdims=True)
    var = ((h - mean) ** 2).mean(0, keepdims=True)
    return (h - mean) * lax.rsqrt(var + 1e-5) * params["gamma"] + params["beta"]


if __name__ == "__main__":
    # Small, module-consistent shapes: N nodes, E directed edges.
    N, E = 8, 16
    in_feats, out_feats, edge_dim = 32, 32, 4

    key = jax.random.PRNGKey(0)
    keys = jax.random.split(key, 12)

    feats = jax.random.normal(keys[0], (N, in_feats), jnp.float32)
    edge_attr = jax.random.normal(keys[1], (E, edge_dim), jnp.float32)
    src = jax.random.randint(keys[2], (E,), 0, N, jnp.int32)
    dst = jax.random.randint(keys[3], (E,), 0, N, jnp.int32)

    def lin_init(kw, kb, fan_in, fan_out):
        bound = 1.0 / jnp.sqrt(jnp.float32(fan_in))
        w = jax.random.uniform(kw, (fan_in, fan_out), jnp.float32, -bound, bound)
        b = jax.random.uniform(kb, (1, fan_out), jnp.float32, -bound, bound)
        return w, b

    w_rel, b_rel = lin_init(keys[4], keys[5], in_feats, out_feats)     # graph_conv.lin_rel
    w_edge, b_edge = lin_init(keys[6], keys[7], edge_dim, out_feats)   # graph_conv.edge_lin
    w_res, b_res = lin_init(keys[8], keys[9], in_feats, out_feats)     # res_connection
    gamma = jnp.ones((1, out_feats), jnp.float32)                      # bn_layer.weight
    beta = jnp.zeros((1, out_feats), jnp.float32)                      # bn_layer.bias

    params = dict(w_rel=w_rel, b_rel=b_rel, w_edge=w_edge, b_edge=b_edge,
                  w_res=w_res, b_res=b_res, gamma=gamma, beta=beta)

    out = gcn_layer_edge(feats, src, dst, edge_attr, params)
    out = jax.block_until_ready(out)

    ref = reference_forward(feats, src, dst, edge_attr, params)
    assert jnp.allclose(out, ref, atol=1e-4, rtol=1e-4), "Pallas kernel mismatch vs reference"

    print("KERNEL_OK")
</pallas_src>

<mosaic_0001>
module attributes {stable_mosaic.version = 11 : i64} {
  func.func @gcn_edge_kernel(%arg0: memref<128x128xf32, #tpu.memory_space<vmem>>, %arg1: memref<128x128xbf16, #tpu.memory_space<vmem>>, %arg2: memref<128x5xf32, #tpu.memory_space<vmem>>, %arg3: memref<128x256xf32, #tpu.memory_space<vmem>>, %arg4: memref<1x256xf32, #tpu.memory_space<vmem>>, %arg5: memref<5x128xf32, #tpu.memory_space<vmem>>, %arg6: memref<1x128xf32, #tpu.memory_space<vmem>>, %arg7: memref<1x128xf32, #tpu.memory_space<vmem>>, %arg8: memref<128x128xf32, #tpu.memory_space<vmem>>) attributes {dimension_semantics = [], scalar_prefetch = 0 : i64, scratch_operands = 0 : i64, tpu.core_type = #tpu.core_type<tc>} {
    %c0 = arith.constant 0 : index
    %c0_0 = arith.constant 0 : index
    %0 = vector.load %arg0[%c0, %c0_0] : memref<128x128xf32, #tpu.memory_space<vmem>>, vector<128x128xf32>
    %c0_1 = arith.constant 0 : index
    %c0_2 = arith.constant 0 : index
    %1 = vector.load %arg3[%c0_1, %c0_2] : memref<128x256xf32, #tpu.memory_space<vmem>>, vector<128x256xf32>
    %cst = arith.constant dense<0.000000e+00> : vector<128x256xf32>
    %2 = tpu.matmul %0, %1, %cst {dimension_numbers = #tpu.dot_dimension_numbers<[1], [0], [0], [1], [0, 0, 1, 1], [], []>} : vector<128x128xf32>, vector<128x256xf32>, vector<128x256xf32> -> vector<128x256xf32>
    %c0_3 = arith.constant 0 : index
    %c0_4 = arith.constant 0 : index
    %3 = vector.load %arg4[%c0_3, %c0_4] : memref<1x256xf32, #tpu.memory_space<vmem>>, vector<1x256xf32>
    %4 = vector.broadcast %3 : vector<1x256xf32> to vector<128x256xf32>
    %5 = arith.addf %2, %4 : vector<128x256xf32>
    %6 = vector.extract_strided_slice %5 {offsets = [0, 0], sizes = [128, 128], strides = [1, 1]} : vector<128x256xf32> to vector<128x128xf32>
    %7 = vector.extract_strided_slice %5 {offsets = [0, 128], sizes = [128, 128], strides = [1, 1]} : vector<128x256xf32> to vector<128x128xf32>
    %cst_5 = arith.constant 0.000000e+00 : f32
    %8 = vector.broadcast %cst_5 : f32 to vector<128x128xf32>
    %9 = arith.maximumf %7, %8 : vector<128x128xf32>
    %c0_6 = arith.constant 0 : index
    %c0_7 = arith.constant 0 : index
    %10 = vector.load %arg1[%c0_6, %c0_7] : memref<128x128xbf16, #tpu.memory_space<vmem>>, vector<128x128xbf16>
    %11 = arith.extf %10 : vector<128x128xbf16> to vector<128x128xf32>
    %cst_8 = arith.constant dense<0.000000e+00> : vector<128x128xf32>
    %12 = tpu.matmul %11, %6, %cst_8 {dimension_numbers = #tpu.dot_dimension_numbers<[1], [0], [0], [1], [0, 0, 1, 1], [], []>} : vector<128x128xf32>, vector<128x128xf32>, vector<128x128xf32> -> vector<128x128xf32>
    %c0_9 = arith.constant 0 : index
    %c0_10 = arith.constant 0 : index
    %13 = vector.load %arg2[%c0_9, %c0_10] : memref<128x5xf32, #tpu.memory_space<vmem>>, vector<128x5xf32>
    %14 = vector.extract_strided_slice %13 {offsets = [0, 0], sizes = [128, 1], strides = [1, 1]} : vector<128x5xf32> to vector<128x1xf32>
    %c0_11 = arith.constant 0 : index
    %c0_12 = arith.constant 0 : index
    %15 = vector.load %arg5[%c0_11, %c0_12] : memref<5x128xf32, #tpu.memory_space<vmem>>, vector<1x128xf32>
    %16 = vector.broadcast %14 : vector<128x1xf32> to vector<128x128xf32>
    %17 = vector.broadcast %15 : vector<1x128xf32> to vector<128x128xf32>
    %18 = arith.mulf %16, %17 : vector<128x128xf32>
    %19 = arith.addf %12, %18 : vector<128x128xf32>
    %20 = vector.extract_strided_slice %13 {offsets = [0, 1], sizes = [128, 1], strides = [1, 1]} : vector<128x5xf32> to vector<128x1xf32>
    %c1 = arith.constant 1 : index
    %c0_13 = arith.constant 0 : index
    %21 = vector.load %arg5[%c1, %c0_13] : memref<5x128xf32, #tpu.memory_space<vmem>>, vector<1x128xf32>
    %22 = vector.broadcast %20 : vector<128x1xf32> to vector<128x128xf32>
    %23 = vector.broadcast %21 : vector<1x128xf32> to vector<128x128xf32>
    %24 = arith.mulf %22, %23 : vector<128x128xf32>
    %25 = arith.addf %19, %24 : vector<128x128xf32>
    %26 = vector.extract_strided_slice %13 {offsets = [0, 2], sizes = [128, 1], strides = [1, 1]} : vector<128x5xf32> to vector<128x1xf32>
    %c2 = arith.constant 2 : index
    %c0_14 = arith.constant 0 : index
    %27 = vector.load %arg5[%c2, %c0_14] : memref<5x128xf32, #tpu.memory_space<vmem>>, vector<1x128xf32>
    %28 = vector.broadcast %26 : vector<128x1xf32> to vector<128x128xf32>
    %29 = vector.broadcast %27 : vector<1x128xf32> to vector<128x128xf32>
    %30 = arith.mulf %28, %29 : vector<128x128xf32>
    %31 = arith.addf %25, %30 : vector<128x128xf32>
    %32 = vector.extract_strided_slice %13 {offsets = [0, 3], sizes = [128, 1], strides = [1, 1]} : vector<128x5xf32> to vector<128x1xf32>
    %c3 = arith.constant 3 : index
    %c0_15 = arith.constant 0 : index
    %33 = vector.load %arg5[%c3, %c0_15] : memref<5x128xf32, #tpu.memory_space<vmem>>, vector<1x128xf32>
    %34 = vector.broadcast %32 : vector<128x1xf32> to vector<128x128xf32>
    %35 = vector.broadcast %33 : vector<1x128xf32> to vector<128x128xf32>
    %36 = arith.mulf %34, %35 : vector<128x128xf32>
    %37 = arith.addf %31, %36 : vector<128x128xf32>
    %38 = vector.extract_strided_slice %13 {offsets = [0, 4], sizes = [128, 1], strides = [1, 1]} : vector<128x5xf32> to vector<128x1xf32>
    %c4 = arith.constant 4 : index
    %c0_16 = arith.constant 0 : index
    %39 = vector.load %arg5[%c4, %c0_16] : memref<5x128xf32, #tpu.memory_space<vmem>>, vector<1x128xf32>
    %40 = vector.broadcast %38 : vector<128x1xf32> to vector<128x128xf32>
    %41 = vector.broadcast %39 : vector<1x128xf32> to vector<128x128xf32>
    %42 = arith.mulf %40, %41 : vector<128x128xf32>
    %43 = arith.addf %37, %42 : vector<128x128xf32>
    %cst_17 = arith.constant 0.000000e+00 : f32
    %44 = vector.broadcast %cst_17 : f32 to vector<128x128xf32>
    %45 = arith.maximumf %43, %44 : vector<128x128xf32>
    %46 = arith.addf %45, %9 : vector<128x128xf32>
    %47 = tpu.iota {dimensions = array<i32: 0>} : vector<128x1xi32>
    %c8_i32 = arith.constant 8 : i32
    %48 = vector.broadcast %c8_i32 : i32 to vector<128x1xi32>
    %49 = arith.cmpi slt, %47, %48 : vector<128x1xi32>
    %50 = arith.extui %49 : vector<128x1xi1> to vector<128x1xi32>
    %51 = arith.sitofp %50 : vector<128x1xi32> to vector<128x1xf32>
    %52 = vector.broadcast %51 : vector<128x1xf32> to vector<128x128xf32>
    %53 = arith.mulf %46, %52 : vector<128x128xf32>
    %cst_18 = arith.constant dense<0.000000e+00> : vector<128xf32>
    %54 = vector.multi_reduction <add>, %53, %cst_18 [0] : vector<128x128xf32> to vector<128xf32>
    %55 = vector.shape_cast %54 : vector<128xf32> to vector<1x128xf32>
    %cst_19 = arith.constant 1.250000e-01 : f32
    %56 = vector.broadcast %cst_19 : f32 to vector<1x128xf32>
    %57 = arith.mulf %55, %56 : vector<1x128xf32>
    %58 = vector.broadcast %57 : vector<1x128xf32> to vector<128x128xf32>
    %59 = arith.subf %53, %58 : vector<128x128xf32>
    %60 = vector.broadcast %51 : vector<128x1xf32> to vector<128x128xf32>
    %61 = arith.mulf %59, %60 : vector<128x128xf32>
    %62 = arith.mulf %61, %61 : vector<128x128xf32>
    %cst_20 = arith.constant dense<0.000000e+00> : vector<128xf32>
    %63 = vector.multi_reduction <add>, %62, %cst_20 [0] : vector<128x128xf32> to vector<128xf32>
    %64 = vector.shape_cast %63 : vector<128xf32> to vector<1x128xf32>
    %cst_21 = arith.constant 1.250000e-01 : f32
    %65 = vector.broadcast %cst_21 : f32 to vector<1x128xf32>
    %66 = arith.mulf %64, %65 : vector<1x128xf32>
    %cst_22 = arith.constant 9.99999974E-6 : f32
    %67 = vector.broadcast %cst_22 : f32 to vector<1x128xf32>
    %68 = arith.addf %66, %67 : vector<1x128xf32>
    %69 = math.rsqrt %68 : vector<1x128xf32>
    %70 = vector.broadcast %57 : vector<1x128xf32> to vector<128x128xf32>
    %71 = arith.subf %53, %70 : vector<128x128xf32>
    %72 = vector.broadcast %69 : vector<1x128xf32> to vector<128x128xf32>
    %73 = arith.mulf %71, %72 : vector<128x128xf32>
    %c0_23 = arith.constant 0 : index
    %c0_24 = arith.constant 0 : index
    %74 = vector.load %arg6[%c0_23, %c0_24] : memref<1x128xf32, #tpu.memory_space<vmem>>, vector<1x128xf32>
    %75 = vector.broadcast %74 : vector<1x128xf32> to vector<128x128xf32>
    %76 = arith.mulf %73, %75 : vector<128x128xf32>
    %c0_25 = arith.constant 0 : index
    %c0_26 = arith.constant 0 : index
    %77 = vector.load %arg7[%c0_25, %c0_26] : memref<1x128xf32, #tpu.memory_space<vmem>>, vector<1x128xf32>
    %78 = vector.broadcast %77 : vector<1x128xf32> to vector<128x128xf32>
    %79 = arith.addf %76, %78 : vector<128x128xf32>
    %c0_27 = arith.constant 0 : index
    %c0_28 = arith.constant 0 : index
    %80 = vector.load %arg8[%c0_27, %c0_28] : memref<128x128xf32, #tpu.memory_space<vmem>>, vector<128x128xf32>
    tpu.vector_store %arg8[%c0_27, %c0_28], %79 {strides = array<i32>} : memref<128x128xf32, #tpu.memory_space<vmem>>, vector<128x128xf32>,
    return
  }
}

</mosaic_0001>

<llo_original>
// kernel: tpu_custom_call.1
$region0: #{tpu_custom_call.1}
  #allocation0 [shape = 'u32[]', space=smem, size = 0x4, offset = 0x4, fixed_abs, tag = 'smem constant byte address 0x4 - core index']
  #allocation1 [shape = 'u32[144,128]{1,0:T(1,128)}', space=vmem, size = 0x12000, scoped, tag = 'internal scratch']
  %s0 = inlined_call_operand.vmem [shape: f32[128,128], index: 0, kind: input, shape index: {}]
  %s1 = inlined_call_operand.hbm [shape: bf16[128,128], index: 1, kind: input, shape index: {}]
  %s2 = inlined_call_operand.vmem [shape: f32[128,5], index: 2, kind: input, shape index: {}]
  %s3 = inlined_call_operand.hbm [shape: f32[128,256], index: 3, kind: input, shape index: {}]
  %s4 = inlined_call_operand.vmem [shape: f32[1,256], index: 4, kind: input, shape index: {}]
  %s5 = inlined_call_operand.vmem [shape: f32[5,128], index: 5, kind: input, shape index: {}]
  %s6 = inlined_call_operand.vmem [shape: f32[1,128], index: 6, kind: input, shape index: {}]
  %s7 = inlined_call_operand.vmem [shape: f32[1,128], index: 7, kind: input, shape index: {}]
  %s8 = inlined_call_operand.hbm [shape: f32[128,128], index: 8, kind: output, shape index: {}]
  %s9 = sld [smem:[#allocation0]]
  $region50: #{tpu_custom_call.1} parent=0
    _
  %s11 = ssub.s32 1, %s9
  %s12 = scalar_select 0, %s11, %s9
  $region1: #{tpu_custom_call.1} parent=0
    #allocation2 [shape = 'u8[32768]{0}', space=vmem, size = 0x8000, scoped, tag = 'input window, operand 1, single buffered']
    #allocation3 [shape = 's32[1]{0}', space=sflag, size = 0x4, scoped, tag = 'scoped memory for tpu_custom_call.1']
    #allocation4 [shape = 's32[1]{0}', space=sflag, size = 0x4, scoped, tag = 'scoped memory for tpu_custom_call.1']
    #allocation5 [shape = 'u8[131072]{0}', space=vmem, size = 0x20000, scoped, tag = 'input window, operand 3, single buffered']
    #allocation6 [shape = 's32[1]{0}', space=sflag, size = 0x4, scoped, tag = 'scoped memory for tpu_custom_call.1']
    #allocation7 [shape = 'u8[65536]{0}', space=vmem, size = 0x10000, scoped, tag = 'output window, operand 0, single buffered']
    %13 = vsyncpa [#allocation3], 0
    %14 = vsyncpa [#allocation6], 0
    %15 = vsyncpa [#allocation4], 0
    // Predicated region
    $region2: #{tpu_custom_call.1} parent=1 // pred_check
      _
    $region3: #{tpu_custom_call.1} parent=1 // pred_check_branch
      %17 = sbr.rel (0) target = $region5
    $region4: #{tpu_custom_call.1} parent=1 // pred_region
      _
    $region5: #{tpu_custom_call.1} parent=1 // pred_fallthru
      _
    // Predicated region
    $region6: #{tpu_custom_call.1} parent=1 // pred_check
      _
    $region7: #{tpu_custom_call.1} parent=1 // pred_check_branch
      %19 = sbr.rel (0) target = $region9
    $region8: #{tpu_custom_call.1} parent=1 // pred_region
      %s21 = ssub.s32 1024, 1024
      %22 = vsyncadd [#allocation3], %s21
      %s23 = sshll.u32 [#allocation2], 4
      %s24 = int_to_ptr.vmem [resolvable:$true] %s23
      %29 = dma.hbm_to_vmem [thread:$0]  %s1, 1024, %s24, [#allocation3], 64, 64, 4
    $region9: #{tpu_custom_call.1} parent=1 // pred_fallthru
      _
    // Predicated region
    $region10: #{tpu_custom_call.1} parent=1 // pred_check
      _
    $region11: #{tpu_custom_call.1} parent=1 // pred_check_branch
      %31 = sbr.rel (0) target = $region13
    $region12: #{tpu_custom_call.1} parent=1 // pred_region
      _
    $region13: #{tpu_custom_call.1} parent=1 // pred_fallthru
      _
    // Predicated region
    $region14: #{tpu_custom_call.1} parent=1 // pred_check
      _
    $region15: #{tpu_custom_call.1} parent=1 // pred_check_branch
      %33 = sbr.rel (0) target = $region17
    $region16: #{tpu_custom_call.1} parent=1 // pred_region
      %s35 = ssub.s32 4096, 4096
      %36 = vsyncadd [#allocation6], %s35
      %s37 = sshll.u32 [#allocation5], 4
      %s38 = int_to_ptr.vmem [resolvable:$true] %s37
      %43 = dma.hbm_to_vmem [thread:$0]  %s3, 4096, %s38, [#allocation6], 256, 256, 16
    $region17: #{tpu_custom_call.1} parent=1 // pred_fallthru
      _
    // Predicated region
    $region18: #{tpu_custom_call.1} parent=1 // pred_check
      _
    $region19: #{tpu_custom_call.1} parent=1 // pred_check_branch
      %45 = sbr.rel (0) target = $region21
    $region20: #{tpu_custom_call.1} parent=1 // pred_region
      _
    $region21: #{tpu_custom_call.1} parent=1 // pred_fallthru
      _
    // Predicated region
    $region22: #{tpu_custom_call.1} parent=1 // pred_check
      _
    $region23: #{tpu_custom_call.1} parent=1 // pred_check_branch
      %47 = sbr.rel (0) target = $region25
    $region24: #{tpu_custom_call.1} parent=1 // pred_region
      _
    $region25: #{tpu_custom_call.1} parent=1 // pred_fallthru
      _
    // Predicated region
    $region26: #{tpu_custom_call.1} parent=1 // pred_check
      _
    $region27: #{tpu_custom_call.1} parent=1 // pred_check_branch
      %49 = sbr.rel (0) target = $region29
    $region28: #{tpu_custom_call.1} parent=1 // pred_region
      _
    $region29: #{tpu_custom_call.1} parent=1 // pred_fallthru
      _
    // Predicated region
    $region30: #{tpu_custom_call.1} parent=1 // pred_check
      _
    $region31: #{tpu_custom_call.1} parent=1 // pred_check_branch
      %51 = sbr.rel (0) target = $region33
    $region32: #{tpu_custom_call.1} parent=1 // pred_region
      _
    $region33: #{tpu_custom_call.1} parent=1 // pred_fallthru
      _
    // Predicated region
    $region34: #{tpu_custom_call.1} parent=1 // pred_check
      _
    $region35: #{tpu_custom_call.1} parent=1 // pred_check_branch
      %53 = sbr.rel (0) target = $region37
    $region36: #{tpu_custom_call.1} parent=1 // pred_region
      %54 = dma.done [#allocation3], 1024
    $region37: #{tpu_custom_call.1} parent=1 // pred_fallthru
      _
    // Predicated region
    $region38: #{tpu_custom_call.1} parent=1 // pred_check
      _
    $region39: #{tpu_custom_call.1} parent=1 // pred_check_branch
      %56 = sbr.rel (0) target = $region41
    $region40: #{tpu_custom_call.1} parent=1 // pred_region
      %57 = dma.done [#allocation6], 4096
    $region41: #{tpu_custom_call.1} parent=1 // pred_fallthru
      _
    %v58 = vld [vmem:[%s0] sm:$0xff]
    %v59 = vld [vmem:[%s0 + $0x8] sm:$0xff]
    %v60 = vld [vmem:[%s0 + $0x10] sm:$0xff]
    %v61 = vld [vmem:[%s0 + $0x18] sm:$0xff]
    %v62 = vld [vmem:[%s0 + $0x20] sm:$0xff]
    %v63 = vld [vmem:[%s0 + $0x28] sm:$0xff]
    %v64 = vld [vmem:[%s0 + $0x30] sm:$0xff]
    %v65 = vld [vmem:[%s0 + $0x38] sm:$0xff]
    %v66 = vld [vmem:[%s0 + $0x40] sm:$0xff]
    %v67 = vld [vmem:[%s0 + $0x48] sm:$0xff]
    %v68 = vld [vmem:[%s0 + $0x50] sm:$0xff]
    %v69 = vld [vmem:[%s0 + $0x58] sm:$0xff]
    %v70 = vld [vmem:[%s0 + $0x60] sm:$0xff]
    %v71 = vld [vmem:[%s0 + $0x68] sm:$0xff]
    %v72 = vld [vmem:[%s0 + $0x70] sm:$0xff]
    %v73 = vld [vmem:[%s0 + $0x78] sm:$0xff]
    %v74 = vld [vmem:[#allocation5] sm:$0xff]
    %v75 = vld [vmem:[#allocation5 + $0x8] sm:$0xff]
    %v76 = vld [vmem:[#allocation5 + $0x10] sm:$0xff]
    %v77 = vld [vmem:[#allocation5 + $0x18] sm:$0xff]
    %v78 = vld [vmem:[#allocation5 + $0x20] sm:$0xff]
    %v79 = vld [vmem:[#allocation5 + $0x28] sm:$0xff]
    %v80 = vld [vmem:[#allocation5 + $0x30] sm:$0xff]
    %v81 = vld [vmem:[#allocation5 + $0x38] sm:$0xff]
    %v82 = vld [vmem:[#allocation5 + $0x40] sm:$0xff]
    %v83 = vld [vmem:[#allocation5 + $0x48] sm:$0xff]
    %v84 = vld [vmem:[#allocation5 + $0x50] sm:$0xff]
    %v85 = vld [vmem:[#allocation5 + $0x58] sm:$0xff]
    %v86 = vld [vmem:[#allocation5 + $0x60] sm:$0xff]
    %v87 = vld [vmem:[#allocation5 + $0x68] sm:$0xff]
    %v88 = vld [vmem:[#allocation5 + $0x70] sm:$0xff]
    %v89 = vld [vmem:[#allocation5 + $0x78] sm:$0xff]
    %v90 = vld [vmem:[#allocation5 + $0x80] sm:$0xff]
    %v91 = vld [vmem:[#allocation5 + $0x88] sm:$0xff]
    %v92 = vld [vmem:[#allocation5 + $0x90] sm:$0xff]
    %v93 = vld [vmem:[#allocation5 + $0x98] sm:$0xff]
    %v94 = vld [vmem:[#allocation5 + $0xa0] sm:$0xff]
    %v95 = vld [vmem:[#allocation5 + $0xa8] sm:$0xff]
    %v96 = vld [vmem:[#allocation5 + $0xb0] sm:$0xff]
    %v97 = vld [vmem:[#allocation5 + $0xb8] sm:$0xff]
    %v98 = vld [vmem:[#allocation5 + $0xc0] sm:$0xff]
    %v99 = vld [vmem:[#allocation5 + $0xc8] sm:$0xff]
    %v100 = vld [vmem:[#allocation5 + $0xd0] sm:$0xff]
    %v101 = vld [vmem:[#allocation5 + $0xd8] sm:$0xff]
    %v102 = vld [vmem:[#allocation5 + $0xe0] sm:$0xff]
    %v103 = vld [vmem:[#allocation5 + $0xe8] sm:$0xff]
    %v104 = vld [vmem:[#allocation5 + $0xf0] sm:$0xff]
    %v105 = vld [vmem:[#allocation5 + $0xf8] sm:$0xff]
    %v106 = vld [vmem:[%s4] sm:$0x3]
    %v108 = vlaneseq
    %v109 = vshrl.u32 %v108, 7
    %v110 = vsub.s32 0, %v109
    %v111 = vrot.slane %v106, %v110
    %v112 = vlaneseq
    %v113 = vshrl.u32 %v112, 7
    %v114 = vsub.s32 1, %v113
    %v115 = vrot.slane %v106, %v114
    %118 = vmatprep.subr.mxu0 %v105
    %119 = vmatpush1.msra.mxu0 %v104
    %120 = vmatprep.subr.mxu0 %v103
    %121 = vmatpush1.msra.mxu0 %v102
    %122 = vmatprep.subr.mxu0 %v101
    %123 = vmatpush1.msra.mxu0 %v100
    %124 = vmatprep.subr.mxu0 %v99
    %125 = vmatpush1.msra.mxu0 %v98
    %126 = vmatprep.subr.mxu0 %v97
    %127 = vmatpush1.msra.mxu0 %v96
    %128 = vmatprep.subr.mxu0 %v95
    %129 = vmatpush1.msra.mxu0 %v94
    %130 = vmatprep.subr.mxu0 %v93
    %131 = vmatpush1.msra.mxu0 %v92
    %132 = vmatprep.subr.mxu0 %v91
    %133 = vmatpush1.msra.mxu0 %v90
    %134 = vmatprep.subr.mxu0 %v89
    %135 = vmatpush1.msra.mxu0 %v88
    %136 = vmatprep.subr.mxu0 %v87
    %137 = vmatpush1.msra.mxu0 %v86
    %138 = vmatprep.subr.mxu0 %v85
    %139 = vmatpush1.msra.mxu0 %v84
    %140 = vmatprep.subr.mxu0 %v83
    %141 = vmatpush1.msra.mxu0 %v82
    %142 = vmatprep.subr.mxu0 %v81
    %143 = vmatpush1.msra.mxu0 %v80
    %144 = vmatprep.subr.mxu0 %v79
    %145 = vmatpush1.msra.mxu0 %v78
    %146 = vmatprep.subr.mxu0 %v77
    %147 = vmatpush1.msra.mxu0 %v76
    %148 = vmatprep.subr.mxu0 %v75
    %149 = vmatpush1.msra.mxu0 %v74
    %150 = vmatprep.subr.mxu0 0.0
    %151 = vmatpush2.msra.mxu0 0.0
    %152 = vmatprep.subr.mxu0 0.0
    %153 = vmatpush2.msra.mxu0 0.0
    %154 = vmatprep.subr.mxu0 0.0
    %155 = vmatpush2.msra.mxu0 0.0
    %156 = vmatprep.subr.mxu0 0.0
    %157 = vmatpush2.msra.mxu0 0.0
    %158 = vmatprep.subr.mxu0 0.0
    %159 = vmatpush2.msra.mxu0 0.0
    %160 = vmatprep.subr.mxu0 0.0
    %161 = vmatpush2.msra.mxu0 0.0
    %162 = vmatprep.subr.mxu0 0.0
    %163 = vmatpush2.msra.mxu0 0.0
    %164 = vmatprep.subr.mxu0 0.0
    %165 = vmatpush2.msra.mxu0 0.0
    %166 = vmatprep.subr.mxu0 0.0
    %167 = vmatpush2.msra.mxu0 0.0
    %168 = vmatprep.subr.mxu0 0.0
    %169 = vmatpush2.msra.mxu0 0.0
    %170 = vmatprep.subr.mxu0 0.0
    %171 = vmatpush2.msra.mxu0 0.0
    %172 = vmatprep.subr.mxu0 0.0
    %173 = vmatpush2.msra.mxu0 0.0
    %174 = vmatprep.subr.mxu0 0.0
    %175 = vmatpush2.msra.mxu0 0.0
    %176 = vmatprep.subr.mxu0 0.0
    %177 = vmatpush2.msra.mxu0 0.0
    %178 = vmatprep.subr.mxu0 0.0
    %179 = vmatpush2.msra.mxu0 0.0
    %180 = vmatprep.subr.mxu0 0.0
    %181 = vmatpush2.msra.mxu0 0.0
    %182 = vmatprep.mubr.f32.mxu0 0.0
    %183 = vmatmul.mubr.f32.gmra.mxu0 %v58
    %v184 = vpop.f32.mrf.mxu0
    %v185 = vadd.f32 %v111, %v184
    %v186 = vpop.f32.mrf.mxu0
    %v187 = vadd.f32 %v115, %v186
    %188 = vmatprep.mubr.f32.mxu0 0.0
    %189 = vmatmul.mubr.f32.gmra.mxu0 %v59
    %v190 = vpop.f32.mrf.mxu0
    %v191 = vadd.f32 %v111, %v190
    %v192 = vpop.f32.mrf.mxu0
    %v193 = vadd.f32 %v115, %v192
    %194 = vmatprep.mubr.f32.mxu0 0.0
    %195 = vmatmul.mubr.f32.gmra.mxu0 %v60
    %v196 = vpop.f32.mrf.mxu0
    %v197 = vadd.f32 %v111, %v196
    %v198 = vpop.f32.mrf.mxu0
    %v199 = vadd.f32 %v115, %v198
    %200 = vmatprep.mubr.f32.mxu0 0.0
    %201 = vmatmul.mubr.f32.gmra.mxu0 %v61
    %v202 = vpop.f32.mrf.mxu0
    %v203 = vadd.f32 %v111, %v202
    %v204 = vpop.f32.mrf.mxu0
    %v205 = vadd.f32 %v115, %v204
    %206 = vmatprep.mubr.f32.mxu0 0.0
    %207 = vmatmul.mubr.f32.gmra.mxu0 %v62
    %v208 = vpop.f32.mrf.mxu0
    %v209 = vadd.f32 %v111, %v208
    %v210 = vpop.f32.mrf.mxu0
    %v211 = vadd.f32 %v115, %v210
    %212 = vmatprep.mubr.f32.mxu0 0.0
    %213 = vmatmul.mubr.f32.gmra.mxu0 %v63
    %v214 = vpop.f32.mrf.mxu0
    %v215 = vadd.f32 %v111, %v214
    %v216 = vpop.f32.mrf.mxu0
    %v217 = vadd.f32 %v115, %v216
    %218 = vmatprep.mubr.f32.mxu0 0.0
    %219 = vmatmul.mubr.f32.gmra.mxu0 %v64
    %v220 = vpop.f32.mrf.mxu0
    %v221 = vadd.f32 %v111, %v220
    %v222 = vpop.f32.mrf.mxu0
    %v223 = vadd.f32 %v115, %v222
    %224 = vmatprep.mubr.f32.mxu0 0.0
    %225 = vmatmul.mubr.f32.gmra.mxu0 %v65
    %v226 = vpop.f32.mrf.mxu0
    %v227 = vadd.f32 %v111, %v226
    %v228 = vpop.f32.mrf.mxu0
    %v229 = vadd.f32 %v115, %v228
    %230 = vmatprep.mubr.f32.mxu0 0.0
    %231 = vmatmul.mubr.f32.gmra.mxu0 %v66
    %v232 = vpop.f32.mrf.mxu0
    %v233 = vadd.f32 %v111, %v232
    %v234 = vpop.f32.mrf.mxu0
    %v235 = vadd.f32 %v115, %v234
    %236 = vmatprep.mubr.f32.mxu0 0.0
    %237 = vmatmul.mubr.f32.gmra.mxu0 %v67
    %v238 = vpop.f32.mrf.mxu0
    %v239 = vadd.f32 %v111, %v238
    %v240 = vpop.f32.mrf.mxu0
    %v241 = vadd.f32 %v115, %v240
    %242 = vmatprep.mubr.f32.mxu0 0.0
    %243 = vmatmul.mubr.f32.gmra.mxu0 %v68
    %v244 = vpop.f32.mrf.mxu0
    %v245 = vadd.f32 %v111, %v244
    %v246 = vpop.f32.mrf.mxu0
    %v247 = vadd.f32 %v115, %v246
    %248 = vmatprep.mubr.f32.mxu0 0.0
    %249 = vmatmul.mubr.f32.gmra.mxu0 %v69
    %v250 = vpop.f32.mrf.mxu0
    %v251 = vadd.f32 %v111, %v250
    %v252 = vpop.f32.mrf.mxu0
    %v253 = vadd.f32 %v115, %v252
    %254 = vmatprep.mubr.f32.mxu0 0.0
    %255 = vmatmul.mubr.f32.gmra.mxu0 %v70
    %v256 = vpop.f32.mrf.mxu0
    %v257 = vadd.f32 %v111, %v256
    %v258 = vpop.f32.mrf.mxu0
    %v259 = vadd.f32 %v115, %v258
    %260 = vmatprep.mubr.f32.mxu0 0.0
    %261 = vmatmul.mubr.f32.gmra.mxu0 %v71
    %v262 = vpop.f32.mrf.mxu0
    %v263 = vadd.f32 %v111, %v262
    %v264 = vpop.f32.mrf.mxu0
    %v265 = vadd.f32 %v115, %v264
    %266 = vmatprep.mubr.f32.mxu0 0.0
    %267 = vmatmul.mubr.f32.gmra.mxu0 %v72
    %v268 = vpop.f32.mrf.mxu0
    %v269 = vadd.f32 %v111, %v268
    %v270 = vpop.f32.mrf.mxu0
    %v271 = vadd.f32 %v115, %v270
    %272 = vmatprep.mubr.f32.mxu0 0.0
    %273 = vmatmul.mubr.f32.gmra.mxu0 %v73
    %v274 = vpop.f32.mrf.mxu0
    %v275 = vadd.f32 %v111, %v274
    %v276 = vpop.f32.mrf.mxu0
    %v277 = vadd.f32 %v115, %v276
    %278 = vdwg.mxu0
    %v279 = vmax.f32 %v187, 0.0
    %v280 = vmax.f32 %v193, 0.0
    %v281 = vmax.f32 %v199, 0.0
    %v282 = vmax.f32 %v205, 0.0
    %v283 = vmax.f32 %v211, 0.0
    %v284 = vmax.f32 %v217, 0.0
    %v285 = vmax.f32 %v223, 0.0
    %v286 = vmax.f32 %v229, 0.0
    %v287 = vmax.f32 %v235, 0.0
    %v288 = vmax.f32 %v241, 0.0
    %v289 = vmax.f32 %v247, 0.0
    %v290 = vmax.f32 %v253, 0.0
    %v291 = vmax.f32 %v259, 0.0
    %v292 = vmax.f32 %v265, 0.0
    %v293 = vmax.f32 %v271, 0.0
    %v294 = vmax.f32 %v277, 0.0
    %v295 = vld [vmem:[#allocation2] sm:$0xf]
    %v296 = vld [vmem:[#allocation2 + $0x4] sm:$0xf]
    %v297 = vld [vmem:[#allocation2 + $0x8] sm:$0xf]
    %v298 = vld [vmem:[#allocation2 + $0xc] sm:$0xf]
    %v299 = vld [vmem:[#allocation2 + $0x10] sm:$0xf]
    %v300 = vld [vmem:[#allocation2 + $0x14] sm:$0xf]
    %v301 = vld [vmem:[#allocation2 + $0x18] sm:$0xf]
    %v302 = vld [vmem:[#allocation2 + $0x1c] sm:$0xf]
    %v303 = vld [vmem:[#allocation2 + $0x20] sm:$0xf]
    %v304 = vld [vmem:[#allocation2 + $0x24] sm:$0xf]
    %v305 = vld [vmem:[#allocation2 + $0x28] sm:$0xf]
    %v306 = vld [vmem:[#allocation2 + $0x2c] sm:$0xf]
    %v307 = vld [vmem:[#allocation2 + $0x30] sm:$0xf]
    %v308 = vld [vmem:[#allocation2 + $0x34] sm:$0xf]
    %v309 = vld [vmem:[#allocation2 + $0x38] sm:$0xf]
    %v310 = vld [vmem:[#allocation2 + $0x3c] sm:$0xf]
    %v311 = vunpack.c.l.bf16 %v295
    %v312 = vunpack.c.l.bf16 %v296
    %v313 = vunpack.c.l.bf16 %v297
    %v314 = vunpack.c.l.bf16 %v298
    %v315 = vunpack.c.l.bf16 %v299
    %v316 = vunpack.c.l.bf16 %v300
    %v317 = vunpack.c.l.bf16 %v301
    %v318 = vunpack.c.l.bf16 %v302
    %v319 = vunpack.c.l.bf16 %v303
    %v320 = vunpack.c.l.bf16 %v304
    %v321 = vunpack.c.l.bf16 %v305
    %v322 = vunpack.c.l.bf16 %v306
    %v323 = vunpack.c.l.bf16 %v307
    %v324 = vunpack.c.l.bf16 %v308
    %v325 = vunpack.c.l.bf16 %v309
    %v326 = vunpack.c.l.bf16 %v310
    %v327 = vld [vmem:[%s2] sm:$0xff]
    %v328 = vld [vmem:[%s2 + $0x8] sm:$0xff]
    %v329 = vld [vmem:[%s2 + $0x10] sm:$0xff]
    %v330 = vld [vmem:[%s2 + $0x18] sm:$0xff]
    %v331 = vld [vmem:[%s2 + $0x20] sm:$0xff]
    %v332 = vld [vmem:[%s2 + $0x28] sm:$0xff]
    %v333 = vld [vmem:[%s2 + $0x30] sm:$0xff]
    %v334 = vld [vmem:[%s2 + $0x38] sm:$0xff]
    %v335 = vld [vmem:[%s2 + $0x40] sm:$0xff]
    %v336 = vld [vmem:[%s2 + $0x48] sm:$0xff]
    %v337 = vld [vmem:[%s2 + $0x50] sm:$0xff]
    %v338 = vld [vmem:[%s2 + $0x58] sm:$0xff]
    %v339 = vld [vmem:[%s2 + $0x60] sm:$0xff]
    %v340 = vld [vmem:[%s2 + $0x68] sm:$0xff]
    %v341 = vld [vmem:[%s2 + $0x70] sm:$0xff]
    %v342 = vld [vmem:[%s2 + $0x78] sm:$0xff]
    %v343 = vld [vmem:[%s5] sm:$0x1]
    %345 = vset.pattern.permute.xlu0 0
    %346 = vperm.xlu0 %345, %v327
    %v347 = vpop.permute.xlu0 %346
    %350 = vset.pattern.permute.xlu0 0
    %351 = vperm.xlu0 %350, %v328
    %v352 = vpop.permute.xlu0 %351
    %355 = vset.pattern.permute.xlu0 0
    %356 = vperm.xlu0 %355, %v329
    %v357 = vpop.permute.xlu0 %356
    %360 = vset.pattern.permute.xlu0 0
    %361 = vperm.xlu0 %360, %v330
    %v362 = vpop.permute.xlu0 %361
    %365 = vset.pattern.permute.xlu0 0
    %366 = vperm.xlu0 %365, %v331
    %v367 = vpop.permute.xlu0 %366
    %370 = vset.pattern.permute.xlu0 0
    %371 = vperm.xlu0 %370, %v332
    %v372 = vpop.permute.xlu0 %371
    %375 = vset.pattern.permute.xlu0 0
    %376 = vperm.xlu0 %375, %v333
    %v377 = vpop.permute.xlu0 %376
    %380 = vset.pattern.permute.xlu0 0
    %381 = vperm.xlu0 %380, %v334
    %v382 = vpop.permute.xlu0 %381
    %385 = vset.pattern.permute.xlu0 0
    %386 = vperm.xlu0 %385, %v335
    %v387 = vpop.permute.xlu0 %386
    %390 = vset.pattern.permute.xlu0 0
    %391 = vperm.xlu0 %390, %v336
    %v392 = vpop.permute.xlu0 %391
    %395 = vset.pattern.permute.xlu0 0
    %396 = vperm.xlu0 %395, %v337
    %v397 = vpop.permute.xlu0 %396
    %400 = vset.pattern.permute.xlu0 0
    %401 = vperm.xlu0 %400, %v338
    %v402 = vpop.permute.xlu0 %401
    %405 = vset.pattern.permute.xlu0 0
    %406 = vperm.xlu0 %405, %v339
    %v407 = vpop.permute.xlu0 %406
    %410 = vset.pattern.permute.xlu0 0
    %411 = vperm.xlu0 %410, %v340
    %v412 = vpop.permute.xlu0 %411
    %415 = vset.pattern.permute.xlu0 0
    %416 = vperm.xlu0 %415, %v341
    %v417 = vpop.permute.xlu0 %416
    %420 = vset.pattern.permute.xlu0 0
    %421 = vperm.xlu0 %420, %v342
    %v422 = vpop.permute.xlu0 %421
    %v424 = vlaneseq
    %v425 = vshrl.u32 %v424, 7
    %v426 = vsub.s32 0, %v425
    %v427 = vrot.slane %v343, %v426
    %v428 = vmul.f32 %v347, %v427
    %v429 = vmul.f32 %v352, %v427
    %v430 = vmul.f32 %v357, %v427
    %v431 = vmul.f32 %v362, %v427
    %v432 = vmul.f32 %v367, %v427
    %v433 = vmul.f32 %v372, %v427
    %v434 = vmul.f32 %v377, %v427
    %v435 = vmul.f32 %v382, %v427
    %v436 = vmul.f32 %v387, %v427
    %v437 = vmul.f32 %v392, %v427
    %v438 = vmul.f32 %v397, %v427
    %v439 = vmul.f32 %v402, %v427
    %v440 = vmul.f32 %v407, %v427
    %v441 = vmul.f32 %v412, %v427
    %v442 = vmul.f32 %v417, %v427
    %v443 = vmul.f32 %v422, %v427
    %444 = vmatprep.subr.mxu0 0.0
    %445 = vmatpush1.msra.mxu0 %v275
    %446 = vmatprep.subr.mxu0 0.0
    %447 = vmatpush1.msra.mxu0 %v269
    %448 = vmatprep.subr.mxu0 0.0
    %449 = vmatpush1.msra.mxu0 %v263
    %450 = vmatprep.subr.mxu0 0.0
    %451 = vmatpush1.msra.mxu0 %v257
    %452 = vmatprep.subr.mxu0 0.0
    %453 = vmatpush1.msra.mxu0 %v251
    %454 = vmatprep.subr.mxu0 0.0
    %455 = vmatpush1.msra.mxu0 %v245
    %456 = vmatprep.subr.mxu0 0.0
    %457 = vmatpush1.msra.mxu0 %v239
    %458 = vmatprep.subr.mxu0 0.0
    %459 = vmatpush1.msra.mxu0 %v233
    %460 = vmatprep.subr.mxu0 0.0
    %461 = vmatpush1.msra.mxu0 %v227
    %462 = vmatprep.subr.mxu0 0.0
    %463 = vmatpush1.msra.mxu0 %v221
    %464 = vmatprep.subr.mxu0 0.0
    %465 = vmatpush1.msra.mxu0 %v215
    %466 = vmatprep.subr.mxu0 0.0
    %467 = vmatpush1.msra.mxu0 %v209
    %468 = vmatprep.subr.mxu0 0.0
    %469 = vmatpush1.msra.mxu0 %v203
    %470 = vmatprep.subr.mxu0 0.0
    %471 = vmatpush1.msra.mxu0 %v197
    %472 = vmatprep.subr.mxu0 0.0
    %473 = vmatpush1.msra.mxu0 %v191
    %474 = vmatprep.subr.mxu0 0.0
    %475 = vmatpush1.msra.mxu0 %v185
    %476 = vmatprep.subr.mxu0 0.0
    %477 = vmatpush2.msra.mxu0 0.0
    %478 = vmatprep.subr.mxu0 0.0
    %479 = vmatpush2.msra.mxu0 0.0
    %480 = vmatprep.subr.mxu0 0.0
    %481 = vmatpush2.msra.mxu0 0.0
    %482 = vmatprep.subr.mxu0 0.0
    %483 = vmatpush2.msra.mxu0 0.0
    %484 = vmatprep.subr.mxu0 0.0
    %485 = vmatpush2.msra.mxu0 0.0
    %486 = vmatprep.subr.mxu0 0.0
    %487 = vmatpush2.msra.mxu0 0.0
    %488 = vmatprep.subr.mxu0 0.0
    %489 = vmatpush2.msra.mxu0 0.0
    %490 = vmatprep.subr.mxu0 0.0
    %491 = vmatpush2.msra.mxu0 0.0
    %492 = vmatprep.subr.mxu0 0.0
    %493 = vmatpush2.msra.mxu0 0.0
    %494 = vmatprep.subr.mxu0 0.0
    %495 = vmatpush2.msra.mxu0 0.0
    %496 = vmatprep.subr.mxu0 0.0
    %497 = vmatpush2.msra.mxu0 0.0
    %498 = vmatprep.subr.mxu0 0.0
    %499 = vmatpush2.msra.mxu0 0.0
    %500 = vmatprep.subr.mxu0 0.0
    %501 = vmatpush2.msra.mxu0 0.0
    %502 = vmatprep.subr.mxu0 0.0
    %503 = vmatpush2.msra.mxu0 0.0
    %504 = vmatprep.subr.mxu0 0.0
    %505 = vmatpush2.msra.mxu0 0.0
    %506 = vmatprep.subr.mxu0 0.0
    %507 = vmatpush2.msra.mxu0 0.0
    %508 = vmatprep.mubr.f32.mxu0 0.0
    %509 = vmatmul.mubr.f32.gmra.mxu0 %v311
    %v510 = vpop.f32.mrf.mxu0
    %v511 = vadd.f32 %v428, %v510
    %v512 = vpop.f32.mrf.mxu0
    %513 = vmatprep.mubr.f32.mxu0 0.0
    %514 = vmatmul.mubr.f32.gmra.mxu0 %v312
    %v515 = vpop.f32.mrf.mxu0
    %v516 = vadd.f32 %v429, %v515
    %v517 = vpop.f32.mrf.mxu0
    %518 = vmatprep.mubr.f32.mxu0 0.0
    %519 = vmatmul.mubr.f32.gmra.mxu0 %v313
    %v520 = vpop.f32.mrf.mxu0
    %v521 = vadd.f32 %v430, %v520
    %v522 = vpop.f32.mrf.mxu0
    %523 = vmatprep.mubr.f32.mxu0 0.0
    %524 = vmatmul.mubr.f32.gmra.mxu0 %v314
    %v525 = vpop.f32.mrf.mxu0
    %v526 = vadd.f32 %v431, %v525
    %v527 = vpop.f32.mrf.mxu0
    %528 = vmatprep.mubr.f32.mxu0 0.0
    %529 = vmatmul.mubr.f32.gmra.mxu0 %v315
    %v530 = vpop.f32.mrf.mxu0
    %v531 = vadd.f32 %v432, %v530
    %v532 = vpop.f32.mrf.mxu0
    %533 = vmatprep.mubr.f32.mxu0 0.0
    %534 = vmatmul.mubr.f32.gmra.mxu0 %v316
    %v535 = vpop.f32.mrf.mxu0
    %v536 = vadd.f32 %v433, %v535
    %v537 = vpop.f32.mrf.mxu0
    %538 = vmatprep.mubr.f32.mxu0 0.0
    %539 = vmatmul.mubr.f32.gmra.mxu0 %v317
    %v540 = vpop.f32.mrf.mxu0
    %v541 = vadd.f32 %v434, %v540
    %v542 = vpop.f32.mrf.mxu0
    %543 = vmatprep.mubr.f32.mxu0 0.0
    %544 = vmatmul.mubr.f32.gmra.mxu0 %v318
    %v545 = vpop.f32.mrf.mxu0
    %v546 = vadd.f32 %v435, %v545
    %v547 = vpop.f32.mrf.mxu0
    %548 = vmatprep.mubr.f32.mxu0 0.0
    %549 = vmatmul.mubr.f32.gmra.mxu0 %v319
    %v550 = vpop.f32.mrf.mxu0
    %v551 = vadd.f32 %v436, %v550
    %v552 = vpop.f32.mrf.mxu0
    %553 = vmatprep.mubr.f32.mxu0 0.0
    %554 = vmatmul.mubr.f32.gmra.mxu0 %v320
    %v555 = vpop.f32.mrf.mxu0
    %v556 = vadd.f32 %v437, %v555
    %v557 = vpop.f32.mrf.mxu0
    %558 = vmatprep.mubr.f32.mxu0 0.0
    %559 = vmatmul.mubr.f32.gmra.mxu0 %v321
    %v560 = vpop.f32.mrf.mxu0
    %v561 = vadd.f32 %v438, %v560
    %v562 = vpop.f32.mrf.mxu0
    %563 = vmatprep.mubr.f32.mxu0 0.0
    %564 = vmatmul.mubr.f32.gmra.mxu0 %v322
    %v565 = vpop.f32.mrf.mxu0
    %v566 = vadd.f32 %v439, %v565
    %v567 = vpop.f32.mrf.mxu0
    %568 = vmatprep.mubr.f32.mxu0 0.0
    %569 = vmatmul.mubr.f32.gmra.mxu0 %v323
    %v570 = vpop.f32.mrf.mxu0
    %v571 = vadd.f32 %v440, %v570
    %v572 = vpop.f32.mrf.mxu0
    %573 = vmatprep.mubr.f32.mxu0 0.0
    %574 = vmatmul.mubr.f32.gmra.mxu0 %v324
    %v575 = vpop.f32.mrf.mxu0
    %v576 = vadd.f32 %v441, %v575
    %v577 = vpop.f32.mrf.mxu0
    %578 = vmatprep.mubr.f32.mxu0 0.0
    %579 = vmatmul.mubr.f32.gmra.mxu0 %v325
    %v580 = vpop.f32.mrf.mxu0
    %v581 = vadd.f32 %v442, %v580
    %v582 = vpop.f32.mrf.mxu0
    %583 = vmatprep.mubr.f32.mxu0 0.0
    %584 = vmatmul.mubr.f32.gmra.mxu0 %v326
    %v585 = vpop.f32.mrf.mxu0
    %v586 = vadd.f32 %v443, %v585
    %v587 = vpop.f32.mrf.mxu0
    %588 = vdwg.mxu0
    %v589 = vld [vmem:[%s5 + $0x1] sm:$0x1]
    %590 = vset.pattern.permute.xlu0 1
    %591 = vperm.xlu0 %590, %v327
    %v592 = vpop.permute.xlu0 %591
    %594 = vset.pattern.permute.xlu0 1
    %595 = vperm.xlu0 %594, %v328
    %v596 = vpop.permute.xlu0 %595
    %598 = vset.pattern.permute.xlu0 1
    %599 = vperm.xlu0 %598, %v329
    %v600 = vpop.permute.xlu0 %599
    %602 = vset.pattern.permute.xlu0 1
    %603 = vperm.xlu0 %602, %v330
    %v604 = vpop.permute.xlu0 %603
    %606 = vset.pattern.permute.xlu0 1
    %607 = vperm.xlu0 %606, %v331
    %v608 = vpop.permute.xlu0 %607
    %610 = vset.pattern.permute.xlu0 1
    %611 = vperm.xlu0 %610, %v332
    %v612 = vpop.permute.xlu0 %611
    %614 = vset.pattern.permute.xlu0 1
    %615 = vperm.xlu0 %614, %v333
    %v616 = vpop.permute.xlu0 %615
    %618 = vset.pattern.permute.xlu0 1
    %619 = vperm.xlu0 %618, %v334
    %v620 = vpop.permute.xlu0 %619
    %622 = vset.pattern.permute.xlu0 1
    %623 = vperm.xlu0 %622, %v335
    %v624 = vpop.permute.xlu0 %623
    %626 = vset.pattern.permute.xlu0 1
    %627 = vperm.xlu0 %626, %v336
    %v628 = vpop.permute.xlu0 %627
    %630 = vset.pattern.permute.xlu0 1
    %631 = vperm.xlu0 %630, %v337
    %v632 = vpop.permute.xlu0 %631
    %634 = vset.pattern.permute.xlu0 1
    %635 = vperm.xlu0 %634, %v338
    %v636 = vpop.permute.xlu0 %635
    %638 = vset.pattern.permute.xlu0 1
    %639 = vperm.xlu0 %638, %v339
    %v640 = vpop.permute.xlu0 %639
    %642 = vset.pattern.permute.xlu0 1
    %643 = vperm.xlu0 %642, %v340
    %v644 = vpop.permute.xlu0 %643
    %646 = vset.pattern.permute.xlu0 1
    %647 = vperm.xlu0 %646, %v341
    %v648 = vpop.permute.xlu0 %647
    %650 = vset.pattern.permute.xlu0 1
    %651 = vperm.xlu0 %650, %v342
    %v652 = vpop.permute.xlu0 %651
    %v654 = vlaneseq
    %v655 = vshrl.u32 %v654, 7
    %v656 = vsub.s32 0, %v655
    %v657 = vrot.slane %v589, %v656
    %v658 = vmul.f32 %v592, %v657
    %v659 = vmul.f32 %v596, %v657
    %v660 = vmul.f32 %v600, %v657
    %v661 = vmul.f32 %v604, %v657
    %v662 = vmul.f32 %v608, %v657
    %v663 = vmul.f32 %v612, %v657
    %v664 = vmul.f32 %v616, %v657
    %v665 = vmul.f32 %v620, %v657
    %v666 = vmul.f32 %v624, %v657
    %v667 = vmul.f32 %v628, %v657
    %v668 = vmul.f32 %v632, %v657
    %v669 = vmul.f32 %v636, %v657
    %v670 = vmul.f32 %v640, %v657
    %v671 = vmul.f32 %v644, %v657
    %v672 = vmul.f32 %v648, %v657
    %v673 = vmul.f32 %v652, %v657
    %v674 = vadd.f32 %v511, %v658
    %v675 = vadd.f32 %v516, %v659
    %v676 = vadd.f32 %v521, %v660
    %v677 = vadd.f32 %v526, %v661
    %v678 = vadd.f32 %v531, %v662
    %v679 = vadd.f32 %v536, %v663
    %v680 = vadd.f32 %v541, %v664
    %v681 = vadd.f32 %v546, %v665
    %v682 = vadd.f32 %v551, %v666
    %v683 = vadd.f32 %v556, %v667
    %v684 = vadd.f32 %v561, %v668
    %v685 = vadd.f32 %v566, %v669
    %v686 = vadd.f32 %v571, %v670
    %v687 = vadd.f32 %v576, %v671
    %v688 = vadd.f32 %v581, %v672
    %v689 = vadd.f32 %v586, %v673
    %v690 = vld [vmem:[%s5 + $0x2] sm:$0x1]
    %691 = vset.pattern.permute.xlu0 2
    %692 = vperm.xlu0 %691, %v327
    %v693 = vpop.permute.xlu0 %692
    %695 = vset.pattern.permute.xlu0 2
    %696 = vperm.xlu0 %695, %v328
    %v697 = vpop.permute.xlu0 %696
    %699 = vset.pattern.permute.xlu0 2
    %700 = vperm.xlu0 %699, %v329
    %v701 = vpop.permute.xlu0 %700
    %703 = vset.pattern.permute.xlu0 2
    %704 = vperm.xlu0 %703, %v330
    %v705 = vpop.permute.xlu0 %704
    %707 = vset.pattern.permute.xlu0 2
    %708 = vperm.xlu0 %707, %v331
    %v709 = vpop.permute.xlu0 %708
    %711 = vset.pattern.permute.xlu0 2
    %712 = vperm.xlu0 %711, %v332
    %v713 = vpop.permute.xlu0 %712
    %715 = vset.pattern.permute.xlu0 2
    %716 = vperm.xlu0 %715, %v333
    %v717 = vpop.permute.xlu0 %716
    %719 = vset.pattern.permute.xlu0 2
    %720 = vperm.xlu0 %719, %v334
    %v721 = vpop.permute.xlu0 %720
    %723 = vset.pattern.permute.xlu0 2
    %724 = vperm.xlu0 %723, %v335
    %v725 = vpop.permute.xlu0 %724
    %727 = vset.pattern.permute.xlu0 2
    %728 = vperm.xlu0 %727, %v336
    %v729 = vpop.permute.xlu0 %728
    %731 = vset.pattern.permute.xlu0 2
    %732 = vperm.xlu0 %731, %v337
    %v733 = vpop.permute.xlu0 %732
    %735 = vset.pattern.permute.xlu0 2
    %736 = vperm.xlu0 %735, %v338
    %v737 = vpop.permute.xlu0 %736
    %739 = vset.pattern.permute.xlu0 2
    %740 = vperm.xlu0 %739, %v339
    %v741 = vpop.permute.xlu0 %740
    %743 = vset.pattern.permute.xlu0 2
    %744 = vperm.xlu0 %743, %v340
    %v745 = vpop.permute.xlu0 %744
    %747 = vset.pattern.permute.xlu0 2
    %748 = vperm.xlu0 %747, %v341
    %v749 = vpop.permute.xlu0 %748
    %751 = vset.pattern.permute.xlu0 2
    %752 = vperm.xlu0 %751, %v342
    %v753 = vpop.permute.xlu0 %752
    %v755 = vlaneseq
    %v756 = vshrl.u32 %v755, 7
    %v757 = vsub.s32 0, %v756
    %v758 = vrot.slane %v690, %v757
    %v759 = vmul.f32 %v693, %v758
    %v760 = vmul.f32 %v697, %v758
    %v761 = vmul.f32 %v701, %v758
    %v762 = vmul.f32 %v705, %v758
    %v763 = vmul.f32 %v709, %v758
    %v764 = vmul.f32 %v713, %v758
    %v765 = vmul.f32 %v717, %v758
    %v766 = vmul.f32 %v721, %v758
    %v767 = vmul.f32 %v725, %v758
    %v768 = vmul.f32 %v729, %v758
    %v769 = vmul.f32 %v733, %v758
    %v770 = vmul.f32 %v737, %v758
    %v771 = vmul.f32 %v741, %v758
    %v772 = vmul.f32 %v745, %v758
    %v773 = vmul.f32 %v749, %v758
    %v774 = vmul.f32 %v753, %v758
    %v775 = vadd.f32 %v674, %v759
    %v776 = vadd.f32 %v675, %v760
    %v777 = vadd.f32 %v676, %v761
    %v778 = vadd.f32 %v677, %v762
    %v779 = vadd.f32 %v678, %v763
    %v780 = vadd.f32 %v679, %v764
    %v781 = vadd.f32 %v680, %v765
    %v782 = vadd.f32 %v681, %v766
    %v783 = vadd.f32 %v682, %v767
    %v784 = vadd.f32 %v683, %v768
    %v785 = vadd.f32 %v684, %v769
    %v786 = vadd.f32 %v685, %v770
    %v787 = vadd.f32 %v686, %v771
    %v788 = vadd.f32 %v687, %v772
    %v789 = vadd.f32 %v688, %v773
    %v790 = vadd.f32 %v689, %v774
    %v791 = vld [vmem:[%s5 + $0x3] sm:$0x1]
    %792 = vset.pattern.permute.xlu0 3
    %793 = vperm.xlu0 %792, %v327
    %v794 = vpop.permute.xlu0 %793
    %796 = vset.pattern.permute.xlu0 3
    %797 = vperm.xlu0 %796, %v328
    %v798 = vpop.permute.xlu0 %797
    %800 = vset.pattern.permute.xlu0 3
    %801 = vperm.xlu0 %800, %v329
    %v802 = vpop.permute.xlu0 %801
    %804 = vset.pattern.permute.xlu0 3
    %805 = vperm.xlu0 %804, %v330
    %v806 = vpop.permute.xlu0 %805
    %808 = vset.pattern.permute.xlu0 3
    %809 = vperm.xlu0 %808, %v331
    %v810 = vpop.permute.xlu0 %809
    %812 = vset.pattern.permute.xlu0 3
    %813 = vperm.xlu0 %812, %v332
    %v814 = vpop.permute.xlu0 %813
    %816 = vset.pattern.permute.xlu0 3
    %817 = vperm.xlu0 %816, %v333
    %v818 = vpop.permute.xlu0 %817
    %820 = vset.pattern.permute.xlu0 3
    %821 = vperm.xlu0 %820, %v334
    %v822 = vpop.permute.xlu0 %821
    %824 = vset.pattern.permute.xlu0 3
    %825 = vperm.xlu0 %824, %v335
    %v826 = vpop.permute.xlu0 %825
    %828 = vset.pattern.permute.xlu0 3
    %829 = vperm.xlu0 %828, %v336
    %v830 = vpop.permute.xlu0 %829
    %832 = vset.pattern.permute.xlu0 3
    %833 = vperm.xlu0 %832, %v337
    %v834 = vpop.permute.xlu0 %833
    %836 = vset.pattern.permute.xlu0 3
    %837 = vperm.xlu0 %836, %v338
    %v838 = vpop.permute.xlu0 %837
    %840 = vset.pattern.permute.xlu0 3
    %841 = vperm.xlu0 %840, %v339
    %v842 = vpop.permute.xlu0 %841
    %844 = vset.pattern.permute.xlu0 3
    %845 = vperm.xlu0 %844, %v340
    %v846 = vpop.permute.xlu0 %845
    %848 = vset.pattern.permute.xlu0 3
    %849 = vperm.xlu0 %848, %v341
    %v850 = vpop.permute.xlu0 %849
    %852 = vset.pattern.permute.xlu0 3
    %853 = vperm.xlu0 %852, %v342
    %v854 = vpop.permute.xlu0 %853
    %v856 = vlaneseq
    %v857 = vshrl.u32 %v856, 7
    %v858 = vsub.s32 0, %v857
    %v859 = vrot.slane %v791, %v858
    %v860 = vmul.f32 %v794, %v859
    %v861 = vmul.f32 %v798, %v859
    %v862 = vmul.f32 %v802, %v859
    %v863 = vmul.f32 %v806, %v859
    %v864 = vmul.f32 %v810, %v859
    %v865 = vmul.f32 %v814, %v859
    %v866 = vmul.f32 %v818, %v859
    %v867 = vmul.f32 %v822, %v859
    %v868 = vmul.f32 %v826, %v859
    %v869 = vmul.f32 %v830, %v859
    %v870 = vmul.f32 %v834, %v859
    %v871 = vmul.f32 %v838, %v859
    %v872 = vmul.f32 %v842, %v859
    %v873 = vmul.f32 %v846, %v859
    %v874 = vmul.f32 %v850, %v859
    %v875 = vmul.f32 %v854, %v859
    %v876 = vadd.f32 %v775, %v860
    %v877 = vadd.f32 %v776, %v861
    %v878 = vadd.f32 %v777, %v862
    %v879 = vadd.f32 %v778, %v863
    %v880 = vadd.f32 %v779, %v864
    %v881 = vadd.f32 %v780, %v865
    %v882 = vadd.f32 %v781, %v866
    %v883 = vadd.f32 %v782, %v867
    %v884 = vadd.f32 %v783, %v868
    %v885 = vadd.f32 %v784, %v869
    %v886 = vadd.f32 %v785, %v870
    %v887 = vadd.f32 %v786, %v871
    %v888 = vadd.f32 %v787, %v872
    %v889 = vadd.f32 %v788, %v873
    %v890 = vadd.f32 %v789, %v874
    %v891 = vadd.f32 %v790, %v875
    %v892 = vld [vmem:[%s5 + $0x4] sm:$0x1]
    %893 = vset.pattern.permute.xlu0 4
    %894 = vperm.xlu0 %893, %v327
    %v895 = vpop.permute.xlu0 %894
    %897 = vset.pattern.permute.xlu0 4
    %898 = vperm.xlu0 %897, %v328
    %v899 = vpop.permute.xlu0 %898
    %901 = vset.pattern.permute.xlu0 4
    %902 = vperm.xlu0 %901, %v329
    %v903 = vpop.permute.xlu0 %902
    %905 = vset.pattern.permute.xlu0 4
    %906 = vperm.xlu0 %905, %v330
    %v907 = vpop.permute.xlu0 %906
    %909 = vset.pattern.permute.xlu0 4
    %910 = vperm.xlu0 %909, %v331
    %v911 = vpop.permute.xlu0 %910
    %913 = vset.pattern.permute.xlu0 4
    %914 = vperm.xlu0 %913, %v332
    %v915 = vpop.permute.xlu0 %914
    %917 = vset.pattern.permute.xlu0 4
    %918 = vperm.xlu0 %917, %v333
    %v919 = vpop.permute.xlu0 %918
    %921 = vset.pattern.permute.xlu0 4
    %922 = vperm.xlu0 %921, %v334
    %v923 = vpop.permute.xlu0 %922
    %925 = vset.pattern.permute.xlu0 4
    %926 = vperm.xlu0 %925, %v335
    %v927 = vpop.permute.xlu0 %926
    %929 = vset.pattern.permute.xlu0 4
    %930 = vperm.xlu0 %929, %v336
    %v931 = vpop.permute.xlu0 %930
    %933 = vset.pattern.permute.xlu0 4
    %934 = vperm.xlu0 %933, %v337
    %v935 = vpop.permute.xlu0 %934
    %937 = vset.pattern.permute.xlu0 4
    %938 = vperm.xlu0 %937, %v338
    %v939 = vpop.permute.xlu0 %938
    %941 = vset.pattern.permute.xlu0 4
    %942 = vperm.xlu0 %941, %v339
    %v943 = vpop.permute.xlu0 %942
    %945 = vset.pattern.permute.xlu0 4
    %946 = vperm.xlu0 %945, %v340
    %v947 = vpop.permute.xlu0 %946
    %949 = vset.pattern.permute.xlu0 4
    %950 = vperm.xlu0 %949, %v341
    %v951 = vpop.permute.xlu0 %950
    %953 = vset.pattern.permute.xlu0 4
    %954 = vperm.xlu0 %953, %v342
    %v955 = vpop.permute.xlu0 %954
    %v957 = vlaneseq
    %v958 = vshrl.u32 %v957, 7
    %v959 = vsub.s32 0, %v958
    %v960 = vrot.slane %v892, %v959
    %v961 = vmul.f32 %v895, %v960
    %v962 = vmul.f32 %v899, %v960
    %v963 = vmul.f32 %v903, %v960
    %v964 = vmul.f32 %v907, %v960
    %v965 = vmul.f32 %v911, %v960
    %v966 = vmul.f32 %v915, %v960
    %v967 = vmul.f32 %v919, %v960
    %v968 = vmul.f32 %v923, %v960
    %v969 = vmul.f32 %v927, %v960
    %v970 = vmul.f32 %v931, %v960
    %v971 = vmul.f32 %v935, %v960
    %v972 = vmul.f32 %v939, %v960
    %v973 = vmul.f32 %v943, %v960
    %v974 = vmul.f32 %v947, %v960
    %v975 = vmul.f32 %v951, %v960
    %v976 = vmul.f32 %v955, %v960
    %v977 = vadd.f32 %v876, %v961
    %v978 = vadd.f32 %v877, %v962
    %v979 = vadd.f32 %v878, %v963
    %v980 = vadd.f32 %v879, %v964
    %v981 = vadd.f32 %v880, %v965
    %v982 = vadd.f32 %v881, %v966
    %v983 = vadd.f32 %v882, %v967
    %v984 = vadd.f32 %v883, %v968
    %v985 = vadd.f32 %v884, %v969
    %v986 = vadd.f32 %v885, %v970
    %v987 = vadd.f32 %v886, %v971
    %v988 = vadd.f32 %v887, %v972
    %v989 = vadd.f32 %v888, %v973
    %v990 = vadd.f32 %v889, %v974
    %v991 = vadd.f32 %v890, %v975
    %v992 = vadd.f32 %v891, %v976
    %v993 = vmax.f32 %v977, 0.0
    %v994 = vmax.f32 %v978, 0.0
    %v995 = vmax.f32 %v979, 0.0
    %v996 = vmax.f32 %v980, 0.0
    %v997 = vmax.f32 %v981, 0.0
    %v998 = vmax.f32 %v982, 0.0
    %v999 = vmax.f32 %v983, 0.0
    %v1000 = vmax.f32 %v984, 0.0
    %v1001 = vmax.f32 %v985, 0.0
    %v1002 = vmax.f32 %v986, 0.0
    %v1003 = vmax.f32 %v987, 0.0
    %v1004 = vmax.f32 %v988, 0.0
    %v1005 = vmax.f32 %v989, 0.0
    %v1006 = vmax.f32 %v990, 0.0
    %v1007 = vmax.f32 %v991, 0.0
    %v1008 = vmax.f32 %v992, 0.0
    %v1009 = vadd.f32 %v993, %v279
    %v1010 = vadd.f32 %v994, %v280
    %v1011 = vadd.f32 %v995, %v281
    %v1012 = vadd.f32 %v996, %v282
    %v1013 = vadd.f32 %v997, %v283
    %v1014 = vadd.f32 %v998, %v284
    %v1015 = vadd.f32 %v999, %v285
    %v1016 = vadd.f32 %v1000, %v286
    %v1017 = vadd.f32 %v1001, %v287
    %v1018 = vadd.f32 %v1002, %v288
    %v1019 = vadd.f32 %v1003, %v289
    %v1020 = vadd.f32 %v1004, %v290
    %v1021 = vadd.f32 %v1005, %v291
    %v1022 = vadd.f32 %v1006, %v292
    %v1023 = vadd.f32 %v1007, %v293
    %v1024 = vadd.f32 %v1008, %v294
    %v1025 = vlaneseq
    %v1026 = vshrl.u32 %v1025, 7
    %v1027 = vadd.s32 %v1026, 8
    %v1028 = vadd.s32 %v1026, 16
    %v1029 = vadd.s32 %v1026, 24
    %v1030 = vadd.s32 %v1026, 32
    %v1031 = vadd.s32 %v1026, 40
    %v1032 = vadd.s32 %v1026, 48
    %v1033 = vadd.s32 %v1026, 56
    %v1034 = vadd.s32 %v1026, 64
    %v1035 = vadd.s32 %v1026, 72
    %v1036 = vadd.s32 %v1026, 80
    %v1037 = vadd.s32 %v1026, 88
    %v1038 = vadd.s32 %v1026, 96
    %v1039 = vadd.s32 %v1026, 104
    %v1040 = vadd.s32 %v1026, 112
    %v1041 = vadd.s32 %v1026, 120
    %vm1042 = vcmp.lt.s32.totalorder %v1026, 8
    %vm1043 = vcmp.lt.s32.totalorder %v1027, 8
    %vm1044 = vcmp.lt.s32.totalorder %v1028, 8
    %vm1045 = vcmp.lt.s32.totalorder %v1029, 8
    %vm1046 = vcmp.lt.s32.totalorder %v1030, 8
    %vm1047 = vcmp.lt.s32.totalorder %v1031, 8
    %vm1048 = vcmp.lt.s32.totalorder %v1032, 8
    %vm1049 = vcmp.lt.s32.totalorder %v1033, 8
    %vm1050 = vcmp.lt.s32.totalorder %v1034, 8
    %vm1051 = vcmp.lt.s32.totalorder %v1035, 8
    %vm1052 = vcmp.lt.s32.totalorder %v1036, 8
    %vm1053 = vcmp.lt.s32.totalorder %v1037, 8
    %vm1054 = vcmp.lt.s32.totalorder %v1038, 8
    %vm1055 = vcmp.lt.s32.totalorder %v1039, 8
    %vm1056 = vcmp.lt.s32.totalorder %v1040, 8
    %vm1057 = vcmp.lt.s32.totalorder %v1041, 8
    %v1058 = vsel %vm1042, 1, 0
    %v1059 = vsel %vm1043, 1, 0
    %v1060 = vsel %vm1044, 1, 0
    %v1061 = vsel %vm1045, 1, 0
    %v1062 = vsel %vm1046, 1, 0
    %v1063 = vsel %vm1047, 1, 0
    %v1064 = vsel %vm1048, 1, 0
    %v1065 = vsel %vm1049, 1, 0
    %v1066 = vsel %vm1050, 1, 0
    %v1067 = vsel %vm1051, 1, 0
    %v1068 = vsel %vm1052, 1, 0
    %v1069 = vsel %vm1053, 1, 0
    %v1070 = vsel %vm1054, 1, 0
    %v1071 = vsel %vm1055, 1, 0
    %v1072 = vsel %vm1056, 1, 0
    %v1073 = vsel %vm1057, 1, 0
    %v1074 = vcvt.s32.f32 %v1058
    %v1075 = vcvt.s32.f32 %v1059
    %v1076 = vcvt.s32.f32 %v1060
    %v1077 = vcvt.s32.f32 %v1061
    %v1078 = vcvt.s32.f32 %v1062
    %v1079 = vcvt.s32.f32 %v1063
    %v1080 = vcvt.s32.f32 %v1064
    %v1081 = vcvt.s32.f32 %v1065
    %v1082 = vcvt.s32.f32 %v1066
    %v1083 = vcvt.s32.f32 %v1067
    %v1084 = vcvt.s32.f32 %v1068
    %v1085 = vcvt.s32.f32 %v1069
    %v1086 = vcvt.s32.f32 %v1070
    %v1087 = vcvt.s32.f32 %v1071
    %v1088 = vcvt.s32.f32 %v1072
    %v1089 = vcvt.s32.f32 %v1073
    %v1090 = vmul.f32 %v1009, %v1074
    %v1091 = vmul.f32 %v1010, %v1075
    %v1092 = vmul.f32 %v1011, %v1076
    %v1093 = vmul.f32 %v1012, %v1077
    %v1094 = vmul.f32 %v1013, %v1078
    %v1095 = vmul.f32 %v1014, %v1079
    %v1096 = vmul.f32 %v1015, %v1080
    %v1097 = vmul.f32 %v1016, %v1081
    %v1098 = vmul.f32 %v1017, %v1082
    %v1099 = vmul.f32 %v1018, %v1083
    %v1100 = vmul.f32 %v1019, %v1084
    %v1101 = vmul.f32 %v1020, %v1085
    %v1102 = vmul.f32 %v1021, %v1086
    %v1103 = vmul.f32 %v1022, %v1087
    %v1104 = vmul.f32 %v1023, %v1088
    %v1105 = vmul.f32 %v1024, %v1089
    %v1106 = vadd.f32 %v1090, %v1091
    %v1107 = vadd.f32 %v1106, %v1092
    %v1108 = vadd.f32 %v1107, %v1093
    %v1109 = vadd.f32 %v1108, %v1094
    %v1110 = vadd.f32 %v1109, %v1095
    %v1111 = vadd.f32 %v1110, %v1096
    %v1112 = vadd.f32 %v1111, %v1097
    %v1113 = vadd.f32 %v1112, %v1098
    %v1114 = vadd.f32 %v1113, %v1099
    %v1115 = vadd.f32 %v1114, %v1100
    %v1116 = vadd.f32 %v1115, %v1101
    %v1117 = vadd.f32 %v1116, %v1102
    %v1118 = vadd.f32 %v1117, %v1103
    %v1119 = vadd.f32 %v1118, %v1104
    %v1120 = vadd.f32 %v1119, %v1105
    %v1121 = vrot.slane %v1120, 4
    %v1122 = vadd.f32 %v1120, %v1121
    %v1123 = vrot.slane %v1122, 2
    %v1124 = vadd.f32 %v1122, %v1123
    %v1125 = vrot.slane %v1124, 1
    %v1126 = vadd.f32 %v1124, %v1125
    %v1127 = vmul.f32 %v1126, 0.125
    %v1128 = vsub.f32 %v1090, %v1127
    %v1129 = vsub.f32 %v1091, %v1127
    %v1130 = vsub.f32 %v1092, %v1127
    %v1131 = vsub.f32 %v1093, %v1127
    %v1132 = vsub.f32 %v1094, %v1127
    %v1133 = vsub.f32 %v1095, %v1127
    %v1134 = vsub.f32 %v1096, %v1127
    %v1135 = vsub.f32 %v1097, %v1127
    %v1136 = vsub.f32 %v1098, %v1127
    %v1137 = vsub.f32 %v1099, %v1127
    %v1138 = vsub.f32 %v1100, %v1127
    %v1139 = vsub.f32 %v1101, %v1127
    %v1140 = vsub.f32 %v1102, %v1127
    %v1141 = vsub.f32 %v1103, %v1127
    %v1142 = vsub.f32 %v1104, %v1127
    %v1143 = vsub.f32 %v1105, %v1127
    %v1144 = vmul.f32 %v1128, %v1074
    %v1145 = vmul.f32 %v1129, %v1075
    %v1146 = vmul.f32 %v1130, %v1076
    %v1147 = vmul.f32 %v1131, %v1077
    %v1148 = vmul.f32 %v1132, %v1078
    %v1149 = vmul.f32 %v1133, %v1079
    %v1150 = vmul.f32 %v1134, %v1080
    %v1151 = vmul.f32 %v1135, %v1081
    %v1152 = vmul.f32 %v1136, %v1082
    %v1153 = vmul.f32 %v1137, %v1083
    %v1154 = vmul.f32 %v1138, %v1084
    %v1155 = vmul.f32 %v1139, %v1085
    %v1156 = vmul.f32 %v1140, %v1086
    %v1157 = vmul.f32 %v1141, %v1087
    %v1158 = vmul.f32 %v1142, %v1088
    %v1159 = vmul.f32 %v1143, %v1089
    %v1160 = vmul.f32 %v1144, %v1144
    %v1161 = vmul.f32 %v1145, %v1145
    %v1162 = vmul.f32 %v1146, %v1146
    %v1163 = vmul.f32 %v1147, %v1147
    %v1164 = vmul.f32 %v1148, %v1148
    %v1165 = vmul.f32 %v1149, %v1149
    %v1166 = vmul.f32 %v1150, %v1150
    %v1167 = vmul.f32 %v1151, %v1151
    %v1168 = vmul.f32 %v1152, %v1152
    %v1169 = vmul.f32 %v1153, %v1153
    %v1170 = vmul.f32 %v1154, %v1154
    %v1171 = vmul.f32 %v1155, %v1155
    %v1172 = vmul.f32 %v1156, %v1156
    %v1173 = vmul.f32 %v1157, %v1157
    %v1174 = vmul.f32 %v1158, %v1158
    %v1175 = vmul.f32 %v1159, %v1159
    %v1176 = vadd.f32 %v1160, %v1161
    %v1177 = vadd.f32 %v1176, %v1162
    %v1178 = vadd.f32 %v1177, %v1163
    %v1179 = vadd.f32 %v1178, %v1164
    %v1180 = vadd.f32 %v1179, %v1165
    %v1181 = vadd.f32 %v1180, %v1166
    %v1182 = vadd.f32 %v1181, %v1167
    %v1183 = vadd.f32 %v1182, %v1168
    %v1184 = vadd.f32 %v1183, %v1169
    %v1185 = vadd.f32 %v1184, %v1170
    %v1186 = vadd.f32 %v1185, %v1171
    %v1187 = vadd.f32 %v1186, %v1172
    %v1188 = vadd.f32 %v1187, %v1173
    %v1189 = vadd.f32 %v1188, %v1174
    %v1190 = vadd.f32 %v1189, %v1175
    %v1191 = vrot.slane %v1190, 4
    %v1192 = vadd.f32 %v1190, %v1191
    %v1193 = vrot.slane %v1192, 2
    %v1194 = vadd.f32 %v1192, %v1193
    %v1195 = vrot.slane %v1194, 1
    %v1196 = vadd.f32 %v1194, %v1195
    %v1197 = vmul.f32 %v1196, 0.125
    %v1198 = vadd.f32 %v1197, 1e-05
    %v1199 = vrsqrt.pop %v1198
    %v1200 = vmul.f32 %v1128, %v1199
    %v1201 = vmul.f32 %v1129, %v1199
    %v1202 = vmul.f32 %v1130, %v1199
    %v1203 = vmul.f32 %v1131, %v1199
    %v1204 = vmul.f32 %v1132, %v1199
    %v1205 = vmul.f32 %v1133, %v1199
    %v1206 = vmul.f32 %v1134, %v1199
    %v1207 = vmul.f32 %v1135, %v1199
    %v1208 = vmul.f32 %v1136, %v1199
    %v1209 = vmul.f32 %v1137, %v1199
    %v1210 = vmul.f32 %v1138, %v1199
    %v1211 = vmul.f32 %v1139, %v1199
    %v1212 = vmul.f32 %v1140, %v1199
    %v1213 = vmul.f32 %v1141, %v1199
    %v1214 = vmul.f32 %v1142, %v1199
    %v1215 = vmul.f32 %v1143, %v1199
    %v1216 = vld [vmem:[%s6] sm:$0x1]
    %v1218 = vlaneseq
    %v1219 = vshrl.u32 %v1218, 7
    %v1220 = vsub.s32 0, %v1219
    %v1221 = vrot.slane %v1216, %v1220
    %v1223 = vmul.f32 %v1200, %v1221
    %v1224 = vmul.f32 %v1201, %v1221
    %v1225 = vmul.f32 %v1202, %v1221
    %v1226 = vmul.f32 %v1203, %v1221
    %v1227 = vmul.f32 %v1204, %v1221
    %v1228 = vmul.f32 %v1205, %v1221
    %v1229 = vmul.f32 %v1206, %v1221
    %v1230 = vmul.f32 %v1207, %v1221
    %v1231 = vmul.f32 %v1208, %v1221
    %v1232 = vmul.f32 %v1209, %v1221
    %v1233 = vmul.f32 %v1210, %v1221
    %v1234 = vmul.f32 %v1211, %v1221
    %v1235 = vmul.f32 %v1212, %v1221
    %v1236 = vmul.f32 %v1213, %v1221
    %v1237 = vmul.f32 %v1214, %v1221
    %v1238 = vmul.f32 %v1215, %v1221
    %v1239 = vld [vmem:[%s7] sm:$0x1]
    %v1241 = vlaneseq
    %v1242 = vshrl.u32 %v1241, 7
    %v1243 = vsub.s32 0, %v1242
    %v1244 = vrot.slane %v1239, %v1243
    %v1246 = vadd.f32 %v1223, %v1244
    %v1247 = vadd.f32 %v1224, %v1244
    %v1248 = vadd.f32 %v1225, %v1244
    %v1249 = vadd.f32 %v1226, %v1244
    %v1250 = vadd.f32 %v1227, %v1244
    %v1251 = vadd.f32 %v1228, %v1244
    %v1252 = vadd.f32 %v1229, %v1244
    %v1253 = vadd.f32 %v1230, %v1244
    %v1254 = vadd.f32 %v1231, %v1244
    %v1255 = vadd.f32 %v1232, %v1244
    %v1256 = vadd.f32 %v1233, %v1244
    %v1257 = vadd.f32 %v1234, %v1244
    %v1258 = vadd.f32 %v1235, %v1244
    %v1259 = vadd.f32 %v1236, %v1244
    %v1260 = vadd.f32 %v1237, %v1244
    %v1261 = vadd.f32 %v1238, %v1244
    %1262 = vst [vmem:[#allocation7] sm:$0xff] %v1246
    %1263 = vst [vmem:[#allocation7 + $0x8] sm:$0xff] %v1247
    %1264 = vst [vmem:[#allocation7 + $0x10] sm:$0xff] %v1248
    %1265 = vst [vmem:[#allocation7 + $0x18] sm:$0xff] %v1249
    %1266 = vst [vmem:[#allocation7 + $0x20] sm:$0xff] %v1250
    %1267 = vst [vmem:[#allocation7 + $0x28] sm:$0xff] %v1251
    %1268 = vst [vmem:[#allocation7 + $0x30] sm:$0xff] %v1252
    %1269 = vst [vmem:[#allocation7 + $0x38] sm:$0xff] %v1253
    %1270 = vst [vmem:[#allocation7 + $0x40] sm:$0xff] %v1254
    %1271 = vst [vmem:[#allocation7 + $0x48] sm:$0xff] %v1255
    %1272 = vst [vmem:[#allocation7 + $0x50] sm:$0xff] %v1256
    %1273 = vst [vmem:[#allocation7 + $0x58] sm:$0xff] %v1257
    %1274 = vst [vmem:[#allocation7 + $0x60] sm:$0xff] %v1258
    %1275 = vst [vmem:[#allocation7 + $0x68] sm:$0xff] %v1259
    %1276 = vst [vmem:[#allocation7 + $0x70] sm:$0xff] %v1260
    %1277 = vst [vmem:[#allocation7 + $0x78] sm:$0xff] %v1261
    // Predicated region
    $region42: #{tpu_custom_call.1} parent=1 // pred_check
      _
    $region43: #{tpu_custom_call.1} parent=1 // pred_check_branch
      %1279 = sbr.rel (0) target = $region45
    $region44: #{tpu_custom_call.1} parent=1 // pred_region
      %s1281 = ssub.s32 2048, 2048
      %1282 = vsyncadd [#allocation4], %s1281
      %s1283 = sshll.u32 [#allocation7], 4
      %s1284 = int_to_ptr.vmem [resolvable:$true] %s1283
      %1289 = dma.vmem_to_hbm [thread:$0]  %s1284, 2048, %s8, [#allocation4], 128, 128, 8
    $region45: #{tpu_custom_call.1} parent=1 // pred_fallthru
      _
    // Predicated region
    $region46: #{tpu_custom_call.1} parent=1 // pred_check
      _
    $region47: #{tpu_custom_call.1} parent=1 // pred_check_branch
      %1291 = sbr.rel (0) target = $region49
    $region48: #{tpu_custom_call.1} parent=1 // pred_region
      %1292 = dma.done [#allocation4], 2048
    $region49: #{tpu_custom_call.1} parent=1 // pred_fallthru
      _
    %1293 = vsyncpa [#allocation3], 1
    %1294 = vsyncpa [#allocation6], 1
    %1295 = vsyncpa [#allocation4], 1

</llo_original>
